<compile_context>
chip_gen: v6e
topology: v6e:2x2x1
jax: 0.10.0
libtpu: 0.0.40
codegen_flags: <defaults>
</compile_context>

<pallas_src>
import jax
import jax.numpy as jnp
from jax import lax
from jax.experimental import pallas as pl
from jax.experimental.pallas import tpu as pltpu

EPS = 1e-5
_INV_SQRT2 = 0.7071067811865476


def mlp_block_kernel(x_ref, w1_ref, b1_ref, w2_ref, b2_ref, o_ref):
    # x_ref: (TM, E) tile of tokens; weights/biases are whole (small) arrays.
    x = x_ref[...].astype(jnp.float32)

    # ---- LayerNorm statistics over the embedding dim (affine folded into W1/b1) ----
    mean = jnp.mean(x, axis=-1, keepdims=True)
    centered = x - mean
    var = jnp.mean(centered * centered, axis=-1, keepdims=True)
    xn = centered * lax.rsqrt(var + EPS)

    # ---- Linear(E -> M) with folded LN affine, then exact (erf) GELU ----
    h = jnp.dot(xn, w1_ref[...], preferred_element_type=jnp.float32) + b1_ref[...]
    h = 0.5 * h * (1.0 + lax.erf(h * jnp.float32(_INV_SQRT2)))

    # Dropout(p=0) is identity -> no-op.

    # ---- Linear(M -> E) ----
    y = jnp.dot(h, w2_ref[...], preferred_element_type=jnp.float32) + b2_ref[...]
    o_ref[...] = y.astype(o_ref.dtype)


def mlp_block(x, gamma, beta, w1, b1, w2, b2, *, row_tile=512):
    """x: (B, S, E).  Returns (B, S, E)."""
    B, S, E = x.shape
    M = w1.shape[1]
    N = B * S

    # Fold LayerNorm affine into the first linear layer (done once on host).
    w1f = (gamma[:, None] * w1).astype(w1.dtype)
    b1f = (beta @ w1 + b1).astype(b1.dtype)

    x2 = x.reshape(N, E)

    # Pick the row tile: big (512) for real workloads, clamped to a sublane-
    # aligned size for tiny inputs so we don't pad 16 tokens up to 512.
    tm = min(row_tile, max(8, ((N + 7) // 8) * 8))
    n_pad = pl.cdiv(N, tm) * tm
    if n_pad != N:
        x2 = jnp.pad(x2, ((0, n_pad - N), (0, 0)))

    grid = (n_pad // tm,)

    out = pl.pallas_call(
        mlp_block_kernel,
        out_shape=jax.ShapeDtypeStruct((n_pad, E), x.dtype),
        grid_spec=pl.GridSpec(
            grid=grid,
            in_specs=[
                pl.BlockSpec((tm, E), lambda i: (i, 0)),   # x tile (streamed)
                pl.BlockSpec((E, M), lambda i: (0, 0)),    # W1' (resident)
                pl.BlockSpec((1, M), lambda i: (0, 0)),    # b1' (resident)
                pl.BlockSpec((M, E), lambda i: (0, 0)),    # W2  (resident)
                pl.BlockSpec((1, E), lambda i: (0, 0)),    # b2  (resident)
            ],
            out_specs=pl.BlockSpec((tm, E), lambda i: (i, 0)),
        ),
        compiler_params=pltpu.CompilerParams(
            dimension_semantics=("parallel",)),
    )(x2, w1f, b1f.reshape(1, M), w2, b2.reshape(1, E))

    if n_pad != N:
        out = out[:N]
    return out.reshape(B, S, E)


def reference_mlp_block(x, gamma, beta, w1, b1, w2, b2):
    mean = jnp.mean(x, axis=-1, keepdims=True)
    var = jnp.mean((x - mean) ** 2, axis=-1, keepdims=True)
    xn = (x - mean) / jnp.sqrt(var + EPS) * gamma + beta
    h = xn @ w1 + b1
    h = 0.5 * h * (1.0 + lax.erf(h / jnp.sqrt(2.0)))
    return h @ w2 + b2


if __name__ == "__main__":
    B, S, E, M = 2, 8, 32, 64   # batch, seq, embedding_dim, mlp_size

    key = jax.random.PRNGKey(0)
    kx, kw1, kb1, kw2, kb2, kg, kbt = jax.random.split(key, 7)

    x = jax.random.normal(kx, (B, S, E), dtype=jnp.float32)

    # LayerNorm params (use non-trivial values to exercise the affine folding).
    gamma = 1.0 + 0.1 * jax.random.normal(kg, (E,), dtype=jnp.float32)
    beta = 0.1 * jax.random.normal(kbt, (E,), dtype=jnp.float32)

    # Linear params (torch-like uniform(-1/sqrt(fan_in), +1/sqrt(fan_in)))
    lim1 = 1.0 / jnp.sqrt(E)
    w1 = jax.random.uniform(kw1, (E, M), jnp.float32, -lim1, lim1)
    b1 = jax.random.uniform(kb1, (M,), jnp.float32, -lim1, lim1)
    lim2 = 1.0 / jnp.sqrt(M)
    w2 = jax.random.uniform(kw2, (M, E), jnp.float32, -lim2, lim2)
    b2 = jax.random.uniform(kb2, (E,), jnp.float32, -lim2, lim2)

    out = mlp_block(x, gamma, beta, w1, b1, w2, b2)
    out = jax.block_until_ready(out)

    ref = reference_mlp_block(x, gamma, beta, w1, b1, w2, b2)
    assert out.shape == (B, S, E)
    assert jnp.allclose(out, ref, atol=1e-4, rtol=1e-4), "mismatch vs reference"

    print("KERNEL_OK")
</pallas_src>

<mosaic_0001>
module attributes {stable_mosaic.version = 11 : i64} {
  func.func @mlp_block_kernel(%arg0: i32, %arg1: memref<16x32xf32, #tpu.memory_space<vmem>>, %arg2: memref<32x64xf32, #tpu.memory_space<vmem>>, %arg3: memref<1x64xf32, #tpu.memory_space<vmem>>, %arg4: memref<64x32xf32, #tpu.memory_space<vmem>>, %arg5: memref<1x32xf32, #tpu.memory_space<vmem>>, %arg6: memref<16x32xf32, #tpu.memory_space<vmem>>) attributes {dimension_semantics = [#tpu.dimension_semantics<parallel>], iteration_bounds = array<i64: 1>, scalar_prefetch = 0 : i64, scratch_operands = 0 : i64, tpu.core_type = #tpu.core_type<tc>, window_params = [{transform_indices = @transform_0, window_bounds = array<i64: 16, 32>}, {pipeline_mode = #tpu.pipeline_mode<synchronous>, transform_indices = @transform_1, window_bounds = array<i64: 32, 64>}, {pipeline_mode = #tpu.pipeline_mode<synchronous>, transform_indices = @transform_2, window_bounds = array<i64: 1, 64>}, {pipeline_mode = #tpu.pipeline_mode<synchronous>, transform_indices = @transform_3, window_bounds = array<i64: 64, 32>}, {pipeline_mode = #tpu.pipeline_mode<synchronous>, transform_indices = @transform_4, window_bounds = array<i64: 1, 32>}, {transform_indices = @transform_5, window_bounds = array<i64: 16, 32>}]} {
    %c0 = arith.constant 0 : index
    %c0_0 = arith.constant 0 : index
    %0 = vector.load %arg1[%c0, %c0_0] : memref<16x32xf32, #tpu.memory_space<vmem>>, vector<16x32xf32>
    %cst = arith.constant dense<0.000000e+00> : vector<16xf32>
    %1 = vector.multi_reduction <add>, %0, %cst [1] : vector<16x32xf32> to vector<16xf32>
    %2 = vector.shape_cast %1 : vector<16xf32> to vector<16x1xf32>
    %cst_1 = arith.constant 3.200000e+01 : f32
    %3 = vector.broadcast %cst_1 : f32 to vector<16x1xf32>
    %4 = arith.divf %2, %3 : vector<16x1xf32>
    %5 = vector.broadcast %4 : vector<16x1xf32> to vector<16x32xf32>
    %6 = arith.subf %0, %5 : vector<16x32xf32>
    %7 = arith.mulf %6, %6 : vector<16x32xf32>
    %cst_2 = arith.constant dense<0.000000e+00> : vector<16xf32>
    %8 = vector.multi_reduction <add>, %7, %cst_2 [1] : vector<16x32xf32> to vector<16xf32>
    %9 = vector.shape_cast %8 : vector<16xf32> to vector<16x1xf32>
    %cst_3 = arith.constant 3.200000e+01 : f32
    %10 = vector.broadcast %cst_3 : f32 to vector<16x1xf32>
    %11 = arith.divf %9, %10 : vector<16x1xf32>
    %cst_4 = arith.constant 9.99999974E-6 : f32
    %12 = vector.broadcast %cst_4 : f32 to vector<16x1xf32>
    %13 = arith.addf %11, %12 : vector<16x1xf32>
    %14 = math.rsqrt %13 : vector<16x1xf32>
    %15 = vector.broadcast %14 : vector<16x1xf32> to vector<16x32xf32>
    %16 = arith.mulf %6, %15 : vector<16x32xf32>
    %c0_5 = arith.constant 0 : index
    %c0_6 = arith.constant 0 : index
    %17 = vector.load %arg2[%c0_5, %c0_6] : memref<32x64xf32, #tpu.memory_space<vmem>>, vector<32x64xf32>
    %cst_7 = arith.constant dense<0.000000e+00> : vector<16x64xf32>
    %18 = tpu.matmul %16, %17, %cst_7 {dimension_numbers = #tpu.dot_dimension_numbers<[1], [0], [0], [1], [0, 0, 1, 1], [], []>} : vector<16x32xf32>, vector<32x64xf32>, vector<16x64xf32> -> vector<16x64xf32>
    %c0_8 = arith.constant 0 : index
    %c0_9 = arith.constant 0 : index
    %19 = vector.load %arg3[%c0_8, %c0_9] : memref<1x64xf32, #tpu.memory_space<vmem>>, vector<1x64xf32>
    %20 = vector.broadcast %19 : vector<1x64xf32> to vector<16x64xf32>
    %21 = arith.addf %18, %20 : vector<16x64xf32>
    %cst_10 = arith.constant 5.000000e-01 : f32
    %22 = vector.broadcast %cst_10 : f32 to vector<16x64xf32>
    %23 = arith.mulf %22, %21 : vector<16x64xf32>
    %cst_11 = arith.constant 0.707106769 : f32
    %24 = vector.broadcast %cst_11 : f32 to vector<16x64xf32>
    %25 = arith.mulf %21, %24 : vector<16x64xf32>
    %26 = math.erf %25 : vector<16x64xf32>
    %cst_12 = arith.constant 1.000000e+00 : f32
    %27 = vector.broadcast %cst_12 : f32 to vector<16x64xf32>
    %28 = arith.addf %27, %26 : vector<16x64xf32>
    %29 = arith.mulf %23, %28 : vector<16x64xf32>
    %c0_13 = arith.constant 0 : index
    %c0_14 = arith.constant 0 : index
    %30 = vector.load %arg4[%c0_13, %c0_14] : memref<64x32xf32, #tpu.memory_space<vmem>>, vector<64x32xf32>
    %cst_15 = arith.constant dense<0.000000e+00> : vector<16x32xf32>
    %31 = tpu.matmul %29, %30, %cst_15 {dimension_numbers = #tpu.dot_dimension_numbers<[1], [0], [0], [1], [0, 0, 1, 1], [], []>} : vector<16x64xf32>, vector<64x32xf32>, vector<16x32xf32> -> vector<16x32xf32>
    %c0_16 = arith.constant 0 : index
    %c0_17 = arith.constant 0 : index
    %32 = vector.load %arg5[%c0_16, %c0_17] : memref<1x32xf32, #tpu.memory_space<vmem>>, vector<1x32xf32>
    %33 = vector.broadcast %32 : vector<1x32xf32> to vector<16x32xf32>
    %34 = arith.addf %31, %33 : vector<16x32xf32>
    %c0_18 = arith.constant 0 : index
    %c0_19 = arith.constant 0 : index
    %35 = vector.load %arg6[%c0_18, %c0_19] : memref<16x32xf32, #tpu.memory_space<vmem>>, vector<16x32xf32>
    tpu.vector_store %arg6[%c0_18, %c0_19], %34 {strides = array<i32>} : memref<16x32xf32, #tpu.memory_space<vmem>>, vector<16x32xf32>,
    return
  }
  func.func @transform_0(%arg0: i32) -> (i32, i32) {
    %c0_i32 = arith.constant 0 : i32
    %c0_i32_0 = arith.constant 0 : i32
    return %arg0, %c0_i32 : i32, i32
  }
  func.func @transform_1(%arg0: i32) -> (i32, i32) {
    %c0_i32 = arith.constant 0 : i32
    %c0_i32_0 = arith.constant 0 : i32
    %c0_i32_1 = arith.constant 0 : i32
    return %c0_i32, %c0_i32_0 : i32, i32
  }
  func.func @transform_2(%arg0: i32) -> (i32, i32) {
    %c0_i32 = arith.constant 0 : i32
    %c0_i32_0 = arith.constant 0 : i32
    %c0_i32_1 = arith.constant 0 : i32
    return %c0_i32, %c0_i32_0 : i32, i32
  }
  func.func @transform_3(%arg0: i32) -> (i32, i32) {
    %c0_i32 = arith.constant 0 : i32
    %c0_i32_0 = arith.constant 0 : i32
    %c0_i32_1 = arith.constant 0 : i32
    return %c0_i32, %c0_i32_0 : i32, i32
  }
  func.func @transform_4(%arg0: i32) -> (i32, i32) {
    %c0_i32 = arith.constant 0 : i32
    %c0_i32_0 = arith.constant 0 : i32
    %c0_i32_1 = arith.constant 0 : i32
    return %c0_i32, %c0_i32_0 : i32, i32
  }
  func.func @transform_5(%arg0: i32) -> (i32, i32) {
    %c0_i32 = arith.constant 0 : i32
    %c0_i32_0 = arith.constant 0 : i32
    return %arg0, %c0_i32 : i32, i32
  }
}

</mosaic_0001>

<llo_original>
// kernel: tpu_custom_call.1
$region0: #{tpu_custom_call.1}
  #allocation0 [shape = 'u32[]', space=smem, size = 0x4, offset = 0x4, fixed_abs, tag = 'smem constant byte address 0x4 - core index']
  #allocation1 [shape = 'u32[144,128]{1,0:T(1,128)}', space=vmem, size = 0x12000, scoped, tag = 'internal scratch']
  %s0 = inlined_call_operand.vmem [shape: f32[16,32], index: 0, kind: input, shape index: {}]
  %s1 = inlined_call_operand.vmem [shape: f32[32,64], index: 1, kind: input, shape index: {}]
  %s2 = inlined_call_operand.vmem [shape: f32[1,64], index: 2, kind: input, shape index: {}]
  %s3 = inlined_call_operand.vmem [shape: f32[64,32], index: 3, kind: input, shape index: {}]
  %s4 = inlined_call_operand.vmem [shape: f32[1,32], index: 4, kind: input, shape index: {}]
  %s5 = inlined_call_operand.hbm [shape: f32[16,32], index: 5, kind: output, shape index: {}]
  %s6 = sld [smem:[#allocation0]]
  $region30: #{tpu_custom_call.1} parent=0
    _
  %s8 = ssub.s32 1, %s6
  %s9 = scalar_select 0, %s8, %s6
  $region1: #{tpu_custom_call.1} parent=0
    #allocation2 [shape = 'u8[8192]{0}', space=vmem, size = 0x2000, scoped, tag = 'output window, operand 0, single buffered']
    #allocation3 [shape = 's32[1]{0}', space=sflag, size = 0x4, scoped, tag = 'scoped memory for tpu_custom_call.1']
    %10 = vsyncpa [#allocation3], 0
    // Predicated region
    $region2: #{tpu_custom_call.1} parent=1 // pred_check
      _
    $region3: #{tpu_custom_call.1} parent=1 // pred_check_branch
      %12 = sbr.rel (0) target = $region5
    $region4: #{tpu_custom_call.1} parent=1 // pred_region
      _
    $region5: #{tpu_custom_call.1} parent=1 // pred_fallthru
      _
    // Predicated region
    $region6: #{tpu_custom_call.1} parent=1 // pred_check
      _
    $region7: #{tpu_custom_call.1} parent=1 // pred_check_branch
      %14 = sbr.rel (0) target = $region9
    $region8: #{tpu_custom_call.1} parent=1 // pred_region
      _
    $region9: #{tpu_custom_call.1} parent=1 // pred_fallthru
      _
    // Predicated region
    $region10: #{tpu_custom_call.1} parent=1 // pred_check
      _
    $region11: #{tpu_custom_call.1} parent=1 // pred_check_branch
      %16 = sbr.rel (0) target = $region13
    $region12: #{tpu_custom_call.1} parent=1 // pred_region
      _
    $region13: #{tpu_custom_call.1} parent=1 // pred_fallthru
      _
    // Predicated region
    $region14: #{tpu_custom_call.1} parent=1 // pred_check
      _
    $region15: #{tpu_custom_call.1} parent=1 // pred_check_branch
      %18 = sbr.rel (0) target = $region17
    $region16: #{tpu_custom_call.1} parent=1 // pred_region
      _
    $region17: #{tpu_custom_call.1} parent=1 // pred_fallthru
      _
    // Predicated region
    $region18: #{tpu_custom_call.1} parent=1 // pred_check
      _
    $region19: #{tpu_custom_call.1} parent=1 // pred_check_branch
      %20 = sbr.rel (0) target = $region21
    $region20: #{tpu_custom_call.1} parent=1 // pred_region
      _
    $region21: #{tpu_custom_call.1} parent=1 // pred_fallthru
      _
    %v21 = vld [vmem:[%s0] sm:$0xff]
    %v22 = vld [vmem:[%s0 + $0x8] sm:$0xff]
    %vm23 = vcmask 261120
    %v24 = vsel %vm23, %v21, 0.0
    %25 = vadd.xlane.f32.xlu0 %v24
    %v26 = vpop.xlane.xlu0 %25
    %v27 = vsel %vm23, %v22, 0.0
    %28 = vadd.xlane.f32.xlu0 %v27
    %v29 = vpop.xlane.xlu0 %28
    %v30 = vrcp.pop 32.0
    %v31 = vmul.f32 %v26, %v30
    %v32 = vmul.f32 %v29, %v30
    %v33 = vsub.f32 %v21, %v31
    %v34 = vsub.f32 %v22, %v32
    %v35 = vmul.f32 %v33, %v33
    %v36 = vmul.f32 %v34, %v34
    %v37 = vsel %vm23, %v35, 0.0
    %38 = vadd.xlane.f32.xlu0 %v37
    %v39 = vpop.xlane.xlu0 %38
    %v40 = vsel %vm23, %v36, 0.0
    %41 = vadd.xlane.f32.xlu0 %v40
    %v42 = vpop.xlane.xlu0 %41
    %v43 = vmul.f32 %v39, %v30
    %v44 = vmul.f32 %v42, %v30
    %v45 = vadd.f32 %v43, 1e-05
    %v46 = vadd.f32 %v44, 1e-05
    %v47 = vrsqrt.pop %v45
    %v48 = vrsqrt.pop %v46
    %v49 = vmul.f32 %v33, %v47
    %v50 = vmul.f32 %v34, %v48
    %v51 = vld [vmem:[%s1] sm:$0xff]
    %v52 = vld [vmem:[%s1 + $0x8] sm:$0xff]
    %v53 = vld [vmem:[%s1 + $0x10] sm:$0xff]
    %v54 = vld [vmem:[%s1 + $0x18] sm:$0xff]
    %v55 = vld [vmem:[%s2] sm:$0x1]
    %v57 = vlaneseq
    %v58 = vshrl.u32 %v57, 7
    %v59 = vsub.s32 0, %v58
    %v60 = vrot.slane %v55, %v59
    %v63 = vsel %vm23, %v49, 0
    %v66 = vsel %vm23, %v50, 0
    %68 = vmatprep.subr.mxu0 0.0
    %69 = vmatpush1.msra.mxu0 0.0
    %70 = vmatprep.subr.mxu0 0.0
    %71 = vmatpush1.msra.mxu0 0.0
    %72 = vmatprep.subr.mxu0 0.0
    %73 = vmatpush1.msra.mxu0 0.0
    %74 = vmatprep.subr.mxu0 0.0
    %75 = vmatpush1.msra.mxu0 0.0
    %76 = vmatprep.subr.mxu0 0.0
    %77 = vmatpush1.msra.mxu0 0.0
    %78 = vmatprep.subr.mxu0 0.0
    %79 = vmatpush1.msra.mxu0 0.0
    %80 = vmatprep.subr.mxu0 0.0
    %81 = vmatpush1.msra.mxu0 0.0
    %82 = vmatprep.subr.mxu0 0.0
    %83 = vmatpush1.msra.mxu0 0.0
    %84 = vmatprep.subr.mxu0 0.0
    %85 = vmatpush1.msra.mxu0 0.0
    %86 = vmatprep.subr.mxu0 0.0
    %87 = vmatpush1.msra.mxu0 0.0
    %88 = vmatprep.subr.mxu0 0.0
    %89 = vmatpush1.msra.mxu0 0.0
    %90 = vmatprep.subr.mxu0 0.0
    %91 = vmatpush1.msra.mxu0 0.0
    %92 = vmatprep.subr.mxu0 0.0
    %93 = vmatpush1.msra.mxu0 %v54
    %94 = vmatprep.subr.mxu0 0.0
    %95 = vmatpush1.msra.mxu0 %v53
    %96 = vmatprep.subr.mxu0 0.0
    %97 = vmatpush1.msra.mxu0 %v52
    %98 = vmatprep.subr.mxu0 0.0
    %99 = vmatpush1.msra.mxu0 %v51
    %100 = vmatprep.subr.mxu0 0.0
    %101 = vmatpush2.msra.mxu0 0.0
    %102 = vmatprep.subr.mxu0 0.0
    %103 = vmatpush2.msra.mxu0 0.0
    %104 = vmatprep.subr.mxu0 0.0
    %105 = vmatpush2.msra.mxu0 0.0
    %106 = vmatprep.subr.mxu0 0.0
    %107 = vmatpush2.msra.mxu0 0.0
    %108 = vmatprep.subr.mxu0 0.0
    %109 = vmatpush2.msra.mxu0 0.0
    %110 = vmatprep.subr.mxu0 0.0
    %111 = vmatpush2.msra.mxu0 0.0
    %112 = vmatprep.subr.mxu0 0.0
    %113 = vmatpush2.msra.mxu0 0.0
    %114 = vmatprep.subr.mxu0 0.0
    %115 = vmatpush2.msra.mxu0 0.0
    %116 = vmatprep.subr.mxu0 0.0
    %117 = vmatpush2.msra.mxu0 0.0
    %118 = vmatprep.subr.mxu0 0.0
    %119 = vmatpush2.msra.mxu0 0.0
    %120 = vmatprep.subr.mxu0 0.0
    %121 = vmatpush2.msra.mxu0 0.0
    %122 = vmatprep.subr.mxu0 0.0
    %123 = vmatpush2.msra.mxu0 0.0
    %124 = vmatprep.subr.mxu0 0.0
    %125 = vmatpush2.msra.mxu0 0.0
    %126 = vmatprep.subr.mxu0 0.0
    %127 = vmatpush2.msra.mxu0 0.0
    %128 = vmatprep.subr.mxu0 0.0
    %129 = vmatpush2.msra.mxu0 0.0
    %130 = vmatprep.subr.mxu0 0.0
    %131 = vmatpush2.msra.mxu0 0.0
    %132 = vmatprep.mubr.f32.mxu0 0.0
    %133 = vmatmul.mubr.f32.gmra.mxu0 %v63
    %v134 = vpop.f32.mrf.mxu0
    %v135 = vadd.f32 %v60, %v134
    %v136 = vpop.f32.mrf.mxu0
    %137 = vmatprep.mubr.f32.mxu0 0.0
    %138 = vmatmul.mubr.f32.gmra.mxu0 %v66
    %v139 = vpop.f32.mrf.mxu0
    %v140 = vadd.f32 %v60, %v139
    %v141 = vpop.f32.mrf.mxu0
    %142 = vdwg.mxu0
    %v143 = vmul.f32 %v135, 0.5
    %v144 = vmul.f32 %v140, 0.5
    %v145 = vmul.f32 %v135, 0.70710677
    %v146 = vmul.f32 %v140, 0.70710677
    %v147 = verf.f32.pop %v145
    %v148 = verf.f32.pop %v146
    %v149 = vadd.f32 %v147, 1.0
    %v150 = vadd.f32 %v148, 1.0
    %v151 = vmul.f32 %v143, %v149
    %v152 = vmul.f32 %v144, %v150
    %v153 = vld [vmem:[%s3] sm:$0xff]
    %v154 = vld [vmem:[%s3 + $0x8] sm:$0xff]
    %v155 = vld [vmem:[%s3 + $0x10] sm:$0xff]
    %v156 = vld [vmem:[%s3 + $0x18] sm:$0xff]
    %v157 = vld [vmem:[%s3 + $0x20] sm:$0xff]
    %v158 = vld [vmem:[%s3 + $0x28] sm:$0xff]
    %v159 = vld [vmem:[%s3 + $0x30] sm:$0xff]
    %v160 = vld [vmem:[%s3 + $0x38] sm:$0xff]
    %v161 = vld [vmem:[%s4] sm:$0x1]
    %v163 = vlaneseq
    %v164 = vshrl.u32 %v163, 7
    %v165 = vsub.s32 0, %v164
    %v166 = vrot.slane %v161, %v165
    %vm168 = vcmask 523264
    %v170 = vsel %vm168, %v151, 0
    %v173 = vsel %vm168, %v152, 0
    %175 = vmatprep.subr.mxu0 0.0
    %176 = vmatpush1.msra.mxu0 0.0
    %177 = vmatprep.subr.mxu0 0.0
    %178 = vmatpush1.msra.mxu0 0.0
    %179 = vmatprep.subr.mxu0 0.0
    %180 = vmatpush1.msra.mxu0 0.0
    %181 = vmatprep.subr.mxu0 0.0
    %182 = vmatpush1.msra.mxu0 0.0
    %183 = vmatprep.subr.mxu0 0.0
    %184 = vmatpush1.msra.mxu0 0.0
    %185 = vmatprep.subr.mxu0 0.0
    %186 = vmatpush1.msra.mxu0 0.0
    %187 = vmatprep.subr.mxu0 0.0
    %188 = vmatpush1.msra.mxu0 0.0
    %189 = vmatprep.subr.mxu0 0.0
    %190 = vmatpush1.msra.mxu0 0.0
    %191 = vmatprep.subr.mxu0 0.0
    %192 = vmatpush1.msra.mxu0 %v160
    %193 = vmatprep.subr.mxu0 0.0
    %194 = vmatpush1.msra.mxu0 %v159
    %195 = vmatprep.subr.mxu0 0.0
    %196 = vmatpush1.msra.mxu0 %v158
    %197 = vmatprep.subr.mxu0 0.0
    %198 = vmatpush1.msra.mxu0 %v157
    %199 = vmatprep.subr.mxu0 0.0
    %200 = vmatpush1.msra.mxu0 %v156
    %201 = vmatprep.subr.mxu0 0.0
    %202 = vmatpush1.msra.mxu0 %v155
    %203 = vmatprep.subr.mxu0 0.0
    %204 = vmatpush1.msra.mxu0 %v154
    %205 = vmatprep.subr.mxu0 0.0
    %206 = vmatpush1.msra.mxu0 %v153
    %207 = vmatprep.subr.mxu0 0.0
    %208 = vmatpush2.msra.mxu0 0.0
    %209 = vmatprep.subr.mxu0 0.0
    %210 = vmatpush2.msra.mxu0 0.0
    %211 = vmatprep.subr.mxu0 0.0
    %212 = vmatpush2.msra.mxu0 0.0
    %213 = vmatprep.subr.mxu0 0.0
    %214 = vmatpush2.msra.mxu0 0.0
    %215 = vmatprep.subr.mxu0 0.0
    %216 = vmatpush2.msra.mxu0 0.0
    %217 = vmatprep.subr.mxu0 0.0
    %218 = vmatpush2.msra.mxu0 0.0
    %219 = vmatprep.subr.mxu0 0.0
    %220 = vmatpush2.msra.mxu0 0.0
    %221 = vmatprep.subr.mxu0 0.0
    %222 = vmatpush2.msra.mxu0 0.0
    %223 = vmatprep.subr.mxu0 0.0
    %224 = vmatpush2.msra.mxu0 0.0
    %225 = vmatprep.subr.mxu0 0.0
    %226 = vmatpush2.msra.mxu0 0.0
    %227 = vmatprep.subr.mxu0 0.0
    %228 = vmatpush2.msra.mxu0 0.0
    %229 = vmatprep.subr.mxu0 0.0
    %230 = vmatpush2.msra.mxu0 0.0
    %231 = vmatprep.subr.mxu0 0.0
    %232 = vmatpush2.msra.mxu0 0.0
    %233 = vmatprep.subr.mxu0 0.0
    %234 = vmatpush2.msra.mxu0 0.0
    %235 = vmatprep.subr.mxu0 0.0
    %236 = vmatpush2.msra.mxu0 0.0
    %237 = vmatprep.subr.mxu0 0.0
    %238 = vmatpush2.msra.mxu0 0.0
    %239 = vmatprep.mubr.f32.mxu0 0.0
    %240 = vmatmul.mubr.f32.gmra.mxu0 %v170
    %v241 = vpop.f32.mrf.mxu0
    %v242 = vadd.f32 %v166, %v241
    %v243 = vpop.f32.mrf.mxu0
    %244 = vmatprep.mubr.f32.mxu0 0.0
    %245 = vmatmul.mubr.f32.gmra.mxu0 %v173
    %v246 = vpop.f32.mrf.mxu0
    %v247 = vadd.f32 %v166, %v246
    %v248 = vpop.f32.mrf.mxu0
    %249 = vdwg.mxu0
    %250 = vst.msk [vmem:[#allocation2] sm:$0xff] %vm23, %v242
    %251 = vst.msk [vmem:[#allocation2 + $0x8] sm:$0xff] %vm23, %v247
    // Predicated region
    $region22: #{tpu_custom_call.1} parent=1 // pred_check
      _
    $region23: #{tpu_custom_call.1} parent=1 // pred_check_branch
      %253 = sbr.rel (0) target = $region25
    $region24: #{tpu_custom_call.1} parent=1 // pred_region
      %s255 = ssub.s32 256, 256
      %256 = vsyncadd [#allocation3], %s255
      %s257 = sshll.u32 [#allocation2], 4
      %s258 = int_to_ptr.vmem [resolvable:$true] %s257
      %263 = dma.vmem_to_hbm [thread:$0]  %s258, 256, %s5, [#allocation3], 128, 128, 8
    $region25: #{tpu_custom_call.1} parent=1 // pred_fallthru
      _
    // Predicated region
    $region26: #{tpu_custom_call.1} parent=1 // pred_check
      _
    $region27: #{tpu_custom_call.1} parent=1 // pred_check_branch
      %265 = sbr.rel (0) target = $region29
    $region28: #{tpu_custom_call.1} parent=1 // pred_region
      %266 = dma.done [#allocation3], 256
    $region29: #{tpu_custom_call.1} parent=1 // pred_fallthru
      _
    %267 = vsyncpa [#allocation3], 1

</llo_original>
